<compile_context>
chip_gen: v7x
topology: tpu7x:2x2x1
jax: 0.10.0
libtpu: 0.0.40
codegen_flags: <defaults>
</compile_context>

<pallas_src>
import jax
import jax.numpy as jnp
import numpy as np
from jax import lax
from jax.experimental import pallas as pl
from jax.experimental.pallas import tpu as pltpu

_EPS = 1e-12            # F.normalize default eps (clamp on the norm)
_EPS2 = _EPS * _EPS     # equivalent clamp on the squared norm (sqrt is monotone)


def _weight_kernel(xpre_ref, xpos_ref, w_ref):
    """w[r] = 1 - sigmoid(cos(x_pre_row_r, x_pos_row_r)) for a (TR, C) row tile."""
    a = xpre_ref[...].astype(jnp.float32)               # (TR, C)
    b = xpos_ref[...].astype(jnp.float32)               # (TR, C)
    dot = jnp.sum(a * b, axis=-1, keepdims=True)        # (TR, 1)
    ssa = jnp.sum(a * a, axis=-1, keepdims=True)
    ssb = jnp.sum(b * b, axis=-1, keepdims=True)
    inv_a = lax.rsqrt(jnp.maximum(ssa, _EPS2))          # EUP; matches F.normalize clamp
    inv_b = lax.rsqrt(jnp.maximum(ssb, _EPS2))
    cos = dot * inv_a * inv_b
    w_ref[...] = jax.nn.sigmoid(-cos)                   # == 1 - sigmoid(cos)


def _scale_kernel(xpos_ref, w_ref, o_ref):
    """out[r, c] = x_pos[r, c] * w[r], written back in the input dtype."""
    x = xpos_ref[...].astype(jnp.float32)               # (TR, C)
    o_ref[...] = (x * w_ref[...]).astype(o_ref.dtype)   # (TR, C) * (TR, 1)


def _round_up(x, m):
    return (x + m - 1) // m * m


def _pick_row_tile(rows, cols, itemsize, target_block_bytes=4 << 20):
    """Row-tile height for a (rows, cols) array of `itemsize`-byte elements.

    Sized against the lane-PADDED width (a (tr, cols) block physically
    occupies tr * round_up(cols, 128) * itemsize bytes in VMEM), aligned to
    the dtype's sublane multiple, and chosen so the grid has at least two
    steps whenever the row count allows it.
    """
    sublane = max(8, 32 // max(1, itemsize))        # 8 f32 / 16 bf16 / 32 int8
    if rows <= sublane:
        return rows                                  # single full-extent block
    padded_row_bytes = _round_up(cols, 128) * itemsize
    budget_rows = max(sublane,
                      (target_block_bytes // padded_row_bytes) // sublane * sublane)
    half_rows = _round_up((rows + 1) // 2, sublane)  # ensure >= 2 grid steps
    return int(min(budget_rows, half_rows))


def cia_forward(x_pre, x_pos):
    assert x_pre.shape == x_pos.shape and x_pre.ndim == 3
    N, B, C = x_pre.shape
    R = N * B
    dtype = x_pos.dtype
    if x_pre.dtype != dtype:
        x_pre = x_pre.astype(dtype)
    itemsize = np.dtype(dtype).itemsize

    # Lane/sublane-dense 2D views; rows follow (n, b) row-major order.
    x_pre2 = x_pre.reshape(R, C)
    x_pos2 = x_pos.reshape(R, C)

    tr = _pick_row_tile(R, C, itemsize)
    grid = (pl.cdiv(R, tr),)

    # Pipeline footprint per pass: 2 big operands x 2 buffers (+ tiny gate
    # blocks + compiler scratch).  Raise the scoped VMEM limit to cover it,
    # capped well under v7x's 64 MiB physical VMEM.
    block_bytes = tr * _round_up(C, 128) * itemsize
    vmem_limit = int(min(48 << 20, max(20 << 20, 4 * block_bytes + (8 << 20))))
    cparams = pltpu.CompilerParams(
        dimension_semantics=("parallel",),
        vmem_limit_bytes=vmem_limit,
    )

    # ---- pass 1: per-row cosine + gate.  w_nb[n*B + b] = 1 - sigmoid(cos(n, b))
    w_nb = pl.pallas_call(
        _weight_kernel,
        out_shape=jax.ShapeDtypeStruct((R, 1), jnp.float32),
        grid=grid,
        in_specs=[
            pl.BlockSpec((tr, C), lambda i: (i, 0)),
            pl.BlockSpec((tr, C), lambda i: (i, 0)),
        ],
        out_specs=pl.BlockSpec((tr, 1), lambda i: (i, 0)),
        compiler_params=cparams,
    )(x_pre2, x_pos2)

    # ---- glue: torch's  weight[B,N,1].unsqueeze(1).reshape(N, B, 1)
    # = flatten the (B, N)-ordered gates row-major and re-read them in (n, b)
    # order.  O(N*B) bytes only — negligible next to the O(N*B*C) streaming.
    w_perm = jnp.transpose(w_nb.reshape(N, B), (1, 0)).reshape(R, 1)

    # ---- pass 2: scale x_pos rows by the permuted gate
    out2 = pl.pallas_call(
        _scale_kernel,
        out_shape=jax.ShapeDtypeStruct((R, C), dtype),
        grid=grid,
        in_specs=[
            pl.BlockSpec((tr, C), lambda i: (i, 0)),
            pl.BlockSpec((tr, 1), lambda i: (i, 0)),
        ],
        out_specs=pl.BlockSpec((tr, C), lambda i: (i, 0)),
        compiler_params=cparams,
    )(x_pos2, w_perm)

    return out2.reshape(N, B, C)


def _reference(x_pre, x_pos):
    """Pure-JAX port of the PyTorch forward (for verification)."""
    N, B, C = x_pre.shape
    xp = x_pre.astype(jnp.float32)
    xq = x_pos.astype(jnp.float32)

    def norm(x):
        n = jnp.maximum(jnp.linalg.norm(x, axis=2, keepdims=True), _EPS)
        return x / n

    fp = norm(xp)
    fl = norm(xq)
    dis = jnp.einsum('bnc,bmc->bnm', jnp.transpose(fp, (1, 0, 2)),
                     jnp.transpose(fl, (1, 0, 2)))            # [B, N, N]
    diag = jnp.diagonal(dis, axis1=1, axis2=2)[..., None]     # [B, N, 1]
    weight = 1.0 - jax.nn.sigmoid(diag)                       # [B, N, 1]
    weight = jnp.reshape(weight[:, None, :, :], (N, B, 1))    # torch reshape quirk
    return (xq * weight).astype(x_pos.dtype)


if __name__ == "__main__":
    key = jax.random.PRNGKey(0)
    k1, k2, k3, k4, k5, k6 = jax.random.split(key, 6)
    fwd = jax.jit(cia_forward)

    # --- aligned f32 case ---------------------------------------------------
    N, B, C = 8, 4, 32
    x_pre = jax.random.normal(k1, (N, B, C), dtype=jnp.float32)
    x_pos = jax.random.normal(k2, (N, B, C), dtype=jnp.float32)
    out = jax.block_until_ready(fwd(x_pre, x_pos))
    ref = jax.block_until_ready(_reference(x_pre, x_pos))
    assert out.shape == (N, B, C) and out.dtype == x_pos.dtype
    np.testing.assert_allclose(np.asarray(out), np.asarray(ref), rtol=1e-5, atol=1e-5)

    # --- ragged row count (exercises the cdiv grid / masked last tile) ------
    N, B, C = 7, 3, 20
    x_pre = jax.random.normal(k3, (N, B, C), dtype=jnp.float32)
    x_pos = jax.random.normal(k4, (N, B, C), dtype=jnp.float32)
    out = jax.block_until_ready(fwd(x_pre, x_pos))
    ref = jax.block_until_ready(_reference(x_pre, x_pos))
    np.testing.assert_allclose(np.asarray(out), np.asarray(ref), rtol=1e-5, atol=1e-5)

    # --- bf16 native-dtype I/O (f32 compute inside the kernels) -------------
    N, B, C = 8, 4, 32
    x_pre = jax.random.normal(k5, (N, B, C), dtype=jnp.float32).astype(jnp.bfloat16)
    x_pos = jax.random.normal(k6, (N, B, C), dtype=jnp.float32).astype(jnp.bfloat16)
    out = jax.block_until_ready(fwd(x_pre, x_pos))
    ref = jax.block_until_ready(_reference(x_pre, x_pos))
    assert out.dtype == jnp.bfloat16
    np.testing.assert_allclose(np.asarray(out.astype(jnp.float32)),
                               np.asarray(ref.astype(jnp.float32)),
                               rtol=2e-2, atol=2e-2)

    print("KERNEL_OK")
</pallas_src>

<mosaic_0001>
module attributes {stable_mosaic.version = 11 : i64} {
  func.func @_weight_kernel(%arg0: i32, %arg1: memref<16x32xf32, #tpu.memory_space<vmem>>, %arg2: memref<16x32xf32, #tpu.memory_space<vmem>>, %arg3: memref<16x1xf32, #tpu.memory_space<vmem>>) attributes {dimension_semantics = [#tpu.dimension_semantics<parallel>], iteration_bounds = array<i64: 2>, scalar_prefetch = 0 : i64, scratch_operands = 0 : i64, tpu.core_type = #tpu.core_type<tc>, window_params = [{transform_indices = @transform_0, window_bounds = array<i64: 16, 32>}, {transform_indices = @transform_1, window_bounds = array<i64: 16, 32>}, {transform_indices = @transform_2, window_bounds = array<i64: 16, 1>}]} {
    %c0 = arith.constant 0 : index
    %c0_0 = arith.constant 0 : index
    %0 = vector.load %arg1[%c0, %c0_0] : memref<16x32xf32, #tpu.memory_space<vmem>>, vector<16x32xf32>
    %c0_1 = arith.constant 0 : index
    %c0_2 = arith.constant 0 : index
    %1 = vector.load %arg2[%c0_1, %c0_2] : memref<16x32xf32, #tpu.memory_space<vmem>>, vector<16x32xf32>
    %2 = arith.mulf %0, %1 : vector<16x32xf32>
    %cst = arith.constant dense<0.000000e+00> : vector<16xf32>
    %3 = vector.multi_reduction <add>, %2, %cst [1] : vector<16x32xf32> to vector<16xf32>
    %4 = vector.shape_cast %3 : vector<16xf32> to vector<16x1xf32>
    %5 = arith.mulf %0, %0 : vector<16x32xf32>
    %cst_3 = arith.constant dense<0.000000e+00> : vector<16xf32>
    %6 = vector.multi_reduction <add>, %5, %cst_3 [1] : vector<16x32xf32> to vector<16xf32>
    %7 = vector.shape_cast %6 : vector<16xf32> to vector<16x1xf32>
    %8 = arith.mulf %1, %1 : vector<16x32xf32>
    %cst_4 = arith.constant dense<0.000000e+00> : vector<16xf32>
    %9 = vector.multi_reduction <add>, %8, %cst_4 [1] : vector<16x32xf32> to vector<16xf32>
    %10 = vector.shape_cast %9 : vector<16xf32> to vector<16x1xf32>
    %cst_5 = arith.constant 1.000000e-24 : f32
    %11 = vector.broadcast %cst_5 : f32 to vector<16x1xf32>
    %12 = arith.maximumf %7, %11 : vector<16x1xf32>
    %13 = math.rsqrt %12 : vector<16x1xf32>
    %cst_6 = arith.constant 1.000000e-24 : f32
    %14 = vector.broadcast %cst_6 : f32 to vector<16x1xf32>
    %15 = arith.maximumf %10, %14 : vector<16x1xf32>
    %16 = math.rsqrt %15 : vector<16x1xf32>
    %17 = arith.mulf %4, %13 : vector<16x1xf32>
    %18 = arith.mulf %17, %16 : vector<16x1xf32>
    %cst_7 = arith.constant 0.000000e+00 : f32
    %19 = vector.broadcast %cst_7 : f32 to vector<16x1xf32>
    %20 = arith.subf %19, %18 : vector<16x1xf32>
    %21 = arith.negf %20 : vector<16x1xf32>
    %22 = math.exp %21 : vector<16x1xf32>
    %cst_8 = arith.constant 1.000000e+00 : f32
    %23 = vector.broadcast %cst_8 : f32 to vector<16x1xf32>
    %24 = arith.addf %23, %22 : vector<16x1xf32>
    %25 = arith.divf %23, %24 : vector<16x1xf32>
    %c0_9 = arith.constant 0 : index
    %c0_10 = arith.constant 0 : index
    %26 = vector.load %arg3[%c0_9, %c0_10] : memref<16x1xf32, #tpu.memory_space<vmem>>, vector<16x1xf32>
    tpu.vector_store %arg3[%c0_9, %c0_10], %25 {strides = array<i32>} : memref<16x1xf32, #tpu.memory_space<vmem>>, vector<16x1xf32>,
    return
  }
  func.func @transform_0(%arg0: i32) -> (i32, i32) {
    %c0_i32 = arith.constant 0 : i32
    %c0_i32_0 = arith.constant 0 : i32
    return %arg0, %c0_i32 : i32, i32
  }
  func.func @transform_1(%arg0: i32) -> (i32, i32) {
    %c0_i32 = arith.constant 0 : i32
    %c0_i32_0 = arith.constant 0 : i32
    return %arg0, %c0_i32 : i32, i32
  }
  func.func @transform_2(%arg0: i32) -> (i32, i32) {
    %c0_i32 = arith.constant 0 : i32
    %c0_i32_0 = arith.constant 0 : i32
    return %arg0, %c0_i32 : i32, i32
  }
}

module attributes {stable_mosaic.version = 11 : i64} {
  func.func @_scale_kernel(%arg0: i32, %arg1: memref<16x32xf32, #tpu.memory_space<vmem>>, %arg2: memref<16x1xf32, #tpu.memory_space<vmem>>, %arg3: memref<16x32xf32, #tpu.memory_space<vmem>>) attributes {dimension_semantics = [#tpu.dimension_semantics<parallel>], iteration_bounds = array<i64: 2>, scalar_prefetch = 0 : i64, scratch_operands = 0 : i64, tpu.core_type = #tpu.core_type<tc>, window_params = [{transform_indices = @transform_0, window_bounds = array<i64: 16, 32>}, {transform_indices = @transform_1, window_bounds = array<i64: 16, 1>}, {transform_indices = @transform_2, window_bounds = array<i64: 16, 32>}]} {
    %c0 = arith.constant 0 : index
    %c0_0 = arith.constant 0 : index
    %0 = vector.load %arg1[%c0, %c0_0] : memref<16x32xf32, #tpu.memory_space<vmem>>, vector<16x32xf32>
    %c0_1 = arith.constant 0 : index
    %c0_2 = arith.constant 0 : index
    %1 = vector.load %arg2[%c0_1, %c0_2] : memref<16x1xf32, #tpu.memory_space<vmem>>, vector<16x1xf32>
    %2 = vector.broadcast %1 : vector<16x1xf32> to vector<16x32xf32>
    %3 = arith.mulf %0, %2 : vector<16x32xf32>
    %c0_3 = arith.constant 0 : index
    %c0_4 = arith.constant 0 : index
    %4 = vector.load %arg3[%c0_3, %c0_4] : memref<16x32xf32, #tpu.memory_space<vmem>>, vector<16x32xf32>
    tpu.vector_store %arg3[%c0_3, %c0_4], %3 {strides = array<i32>} : memref<16x32xf32, #tpu.memory_space<vmem>>, vector<16x32xf32>,
    return
  }
  func.func @transform_0(%arg0: i32) -> (i32, i32) {
    %c0_i32 = arith.constant 0 : i32
    %c0_i32_0 = arith.constant 0 : i32
    return %arg0, %c0_i32 : i32, i32
  }
  func.func @transform_1(%arg0: i32) -> (i32, i32) {
    %c0_i32 = arith.constant 0 : i32
    %c0_i32_0 = arith.constant 0 : i32
    return %arg0, %c0_i32 : i32, i32
  }
  func.func @transform_2(%arg0: i32) -> (i32, i32) {
    %c0_i32 = arith.constant 0 : i32
    %c0_i32_0 = arith.constant 0 : i32
    return %arg0, %c0_i32 : i32, i32
  }
}

</mosaic_0001>

<llo_original>
// kernel: cia_forward.2
$region0: #{cia_forward.2}
  #allocation0 [shape = 'u32[]', space=smem, size = 0x4, offset = 0x4, fixed_abs, tag = 'smem constant byte address 0x4 - core index']
  #allocation1 [shape = 'u32[144,128]{1,0:T(1,128)}', space=vmem, size = 0x12000, scoped, tag = 'internal scratch']
  %s0 = inlined_call_operand.hbm [shape: f32[32,32], index: 0, kind: input, shape index: {}]
  %s1 = inlined_call_operand.hbm [shape: f32[32,32], index: 1, kind: input, shape index: {}]
  %s2 = inlined_call_operand.vmem [shape: f32[32,1], index: 2, kind: output, shape index: {}]
  %s3 = sld [smem:[#allocation0]]
  $region49: #{cia_forward.2} parent=0
    _
  %s5 = ssub.s32 1, %s3
  %s6 = scalar_select 0, %s5, %s3
  $region1: #{cia_forward.2} parent=0
    #allocation2 [shape = 'u8[16384]{0}', space=vmem, size = 0x4000, scoped, tag = 'input window, operand 0']
    #allocation3 [shape = 's32[2]{0}', space=sflag, size = 0x8, scoped, tag = 'scoped memory for cia_forward.2']
    #allocation4 [shape = 'u8[16384]{0}', space=vmem, size = 0x4000, scoped, tag = 'input window, operand 1']
    #allocation5 [shape = 's32[2]{0}', space=sflag, size = 0x8, scoped, tag = 'scoped memory for cia_forward.2']
    %7 = vsyncpa [#allocation3], 0
    %s8 = scalar_lea.sflag [#allocation3], 1
    %9 = vsyncpa %s8, 0
    %10 = vsyncpa [#allocation5], 0
    %s11 = scalar_lea.sflag [#allocation5], 1
    %12 = vsyncpa %s11, 0
    loop: start=0, step=1, limit=4
    $region2: #{cia_forward.2} parent=1 // loop_pre_header
      _
    $region3: #{cia_forward.2} parent=1 // loop_header
      %s14 = sphi 0, %s18
      %p15 = scmp.ge.s32.totalorder %s14, 4
      %s24 = sphi 0, %s26
      %s27 = sphi 0, %s24
      %s28 = sphi 0, %s27
      %s44 = sphi 0, %s28
      %s50 = sphi 0, %s52
      %s53 = sphi 0, %s50
      %s54 = sphi 0, %s53
      %s70 = sphi 0, %s54
      %s76 = sphi 0, %s78
      %s79 = sphi 0, %s76
      %s80 = sphi 0, %s79
      %s96 = sphi 0, %s80
    $region4: #{cia_forward.2} parent=1 // loop_header_branch
      %17 = sbr.rel (%p15) target = $region8
    $region5: #{cia_forward.2} parent=1 // loop_body
      %s19 = ssub.s32 %s14, 1
      %s20 = ssub.s32 %s14, 2
      %s21 = sadd.s32 %s14, 1
      %s22 = ssub.s32 %s14, %s21
      %p23 = scmp.eq.s32.totalorder %s22, 0
      %s25 = sadd.s32 %s24, 1
      %s26 = scalar_select %p23, %s24, %s25
      %p29 = pneg %p23
      %p30 = scmp.eq.s32.totalorder %s14, 1
      %p31 = por %p29, %p30
      %p32 = scmp.ne.s32.totalorder %s24, %s27
      %p33 = scmp.eq.s32.totalorder %s14, 0
      %p34 = por %p32, %p33
      %p35 = scmp.ne.s32.totalorder %s24, %s27
      %p36 = scmp.eq.s32.totalorder %s19, 1
      %p37 = por %p35, %p36
      %p38 = scmp.ne.s32.totalorder %s27, %s28
      %p39 = scmp.eq.s32.totalorder %s19, 0
      %p40 = por %p38, %p39
      %p41 = scmp.ne.s32.totalorder %s27, %s28
      %p42 = scmp.eq.s32.totalorder %s20, 1
      %p43 = por %p41, %p42
      %p45 = scmp.ne.s32.totalorder %s28, %s44
      %p46 = scmp.eq.s32.totalorder %s20, 0
      %p47 = por %p45, %p46
      %s48 = ssub.s32 %s14, %s21
      %p49 = scmp.eq.s32.totalorder %s48, 0
      %s51 = sadd.s32 %s50, 1
      %s52 = scalar_select %p49, %s50, %s51
      %p55 = pneg %p49
      %p56 = scmp.eq.s32.totalorder %s14, 1
      %p57 = por %p55, %p56
      %p58 = scmp.ne.s32.totalorder %s50, %s53
      %p59 = scmp.eq.s32.totalorder %s14, 0
      %p60 = por %p58, %p59
      %p61 = scmp.ne.s32.totalorder %s50, %s53
      %p62 = scmp.eq.s32.totalorder %s19, 1
      %p63 = por %p61, %p62
      %p64 = scmp.ne.s32.totalorder %s53, %s54
      %p65 = scmp.eq.s32.totalorder %s19, 0
      %p66 = por %p64, %p65
      %p67 = scmp.ne.s32.totalorder %s53, %s54
      %p68 = scmp.eq.s32.totalorder %s20, 1
      %p69 = por %p67, %p68
      %p71 = scmp.ne.s32.totalorder %s54, %s70
      %p72 = scmp.eq.s32.totalorder %s20, 0
      %p73 = por %p71, %p72
      %s74 = ssub.s32 %s14, %s21
      %p75 = scmp.eq.s32.totalorder %s74, 0
      %s77 = sadd.s32 %s76, 1
      %s78 = scalar_select %p75, %s76, %s77
      %p81 = pneg %p75
      %p82 = scmp.eq.s32.totalorder %s14, 1
      %p83 = por %p81, %p82
      %p84 = scmp.ne.s32.totalorder %s76, %s79
      %p85 = scmp.eq.s32.totalorder %s14, 0
      %p86 = por %p84, %p85
      %p87 = scmp.ne.s32.totalorder %s76, %s79
      %p88 = scmp.eq.s32.totalorder %s19, 1
      %p89 = por %p87, %p88
      %p90 = scmp.ne.s32.totalorder %s79, %s80
      %p91 = scmp.eq.s32.totalorder %s19, 0
      %p92 = por %p90, %p91
      %p93 = scmp.ne.s32.totalorder %s79, %s80
      %p94 = scmp.eq.s32.totalorder %s20, 1
      %p95 = por %p93, %p94
      %p97 = scmp.ne.s32.totalorder %s80, %s96
      %p98 = scmp.eq.s32.totalorder %s20, 0
      %p99 = por %p97, %p98
      %p100 = scmp.le.s32.totalorder 1, %s14
      %p101 = scmp.lt.s32.totalorder %s14, 3
      %p102 = pnand %p100, %p101
      %p103 = pneg %p102
      // Predicated region
      $region9: #{cia_forward.2} parent=5 // pred_check
        _
      $region10: #{cia_forward.2} parent=5 // pred_check_branch
        %105 = sbr.rel (%p102) target = $region12
      $region11: #{cia_forward.2} parent=5 // pred_region
        %s106 = ssub.s32 %s14, 1
      $region12: #{cia_forward.2} parent=5 // pred_fallthru
        _
      %p107 = scmp.lt.s32.totalorder %s14, 2
      // Predicated region
      $region13: #{cia_forward.2} parent=5 // pred_check
        %p108 = pneg %p107
      $region14: #{cia_forward.2} parent=5 // pred_check_branch
        %110 = sbr.rel (%p108) target = $region16
      $region15: #{cia_forward.2} parent=5 // pred_region
        // Predicated region
        $region17: #{cia_forward.2} parent=15 // pred_check
          %p111 = pneg %p34
        $region18: #{cia_forward.2} parent=15 // pred_check_branch
          %113 = sbr.rel (%p111) target = $region20
        $region19: #{cia_forward.2} parent=15 // pred_region
          %s114 = sand.u32 %s24, 1
          %s115 = scalar_lea.sflag [#allocation3], %s114
          %s116 = sand.u32 %s24, 1
          %s117 = smul.addr %s116, 16
          %s118 = scalar_lea.vmem [#allocation2], %s117
          %s119 = smul.u32 2, %s14
          %s121 = ssub.s32 256, 256
          %122 = vsyncadd %s115, %s121
          %s123 = smul.addr %s119, 128
          %s124 = scalar_lea.hbm %s0, %s123
          %s125 = sshll.u32 %s118, 4
          %s126 = int_to_ptr.vmem [resolvable:$true] %s125
          %131 = dma.hbm_to_vmem [thread:$0]  %s124, 256, %s126, %s115, 128, 128, 8
        $region20: #{cia_forward.2} parent=15 // pred_fallthru
          _
        // Predicated region
        $region21: #{cia_forward.2} parent=15 // pred_check
          %p132 = pneg %p60
        $region22: #{cia_forward.2} parent=15 // pred_check_branch
          %134 = sbr.rel (%p132) target = $region24
        $region23: #{cia_forward.2} parent=15 // pred_region
          %s135 = sand.u32 %s50, 1
          %s136 = scalar_lea.sflag [#allocation5], %s135
          %s137 = sand.u32 %s50, 1
          %s138 = smul.addr %s137, 16
          %s139 = scalar_lea.vmem [#allocation4], %s138
          %s140 = smul.u32 2, %s14
          %s142 = ssub.s32 256, 256
          %143 = vsyncadd %s136, %s142
          %s144 = smul.addr %s140, 128
          %s145 = scalar_lea.hbm %s1, %s144
          %s146 = sshll.u32 %s139, 4
          %s147 = int_to_ptr.vmem [resolvable:$true] %s146
          %152 = dma.hbm_to_vmem [thread:$0]  %s145, 256, %s147, %s136, 128, 128, 8
        $region24: #{cia_forward.2} parent=15 // pred_fallthru
          _
      $region16: #{cia_forward.2} parent=5 // pred_fallthru
        _
      %p153 = scmp.le.s32.totalorder 1, %s14
      %p154 = scmp.lt.s32.totalorder %s14, 3
      %p155 = pnand %p153, %p154
      %p156 = pneg %p155
      // Predicated region
      $region25: #{cia_forward.2} parent=5 // pred_check
        _
      $region26: #{cia_forward.2} parent=5 // pred_check_branch
        %158 = sbr.rel (%p155) target = $region28
      $region27: #{cia_forward.2} parent=5 // pred_region
        %s159 = ssub.s32 %s14, 1
        %s160 = sand.u32 %s27, 1
        %s161 = scalar_lea.sflag [#allocation3], %s160
        %s162 = sand.u32 %s27, 1
        %s163 = smul.addr %s162, 16
        %s164 = scalar_lea.vmem [#allocation2], %s163
        // Predicated region
        $region29: #{cia_forward.2} parent=27 // pred_check
          %p165 = pneg %p40
        $region30: #{cia_forward.2} parent=27 // pred_check_branch
          %167 = sbr.rel (%p165) target = $region32
        $region31: #{cia_forward.2} parent=27 // pred_region
          %168 = dma.done %s161, 256
        $region32: #{cia_forward.2} parent=27 // pred_fallthru
          _
        %s169 = sand.u32 %s53, 1
        %s170 = scalar_lea.sflag [#allocation5], %s169
        %s171 = sand.u32 %s53, 1
        %s172 = smul.addr %s171, 16
        %s173 = scalar_lea.vmem [#allocation4], %s172
        // Predicated region
        $region33: #{cia_forward.2} parent=27 // pred_check
          %p174 = pneg %p66
        $region34: #{cia_forward.2} parent=27 // pred_check_branch
          %176 = sbr.rel (%p174) target = $region36
        $region35: #{cia_forward.2} parent=27 // pred_region
          %177 = dma.done %s170, 256
        $region36: #{cia_forward.2} parent=27 // pred_fallthru
          _
        %s178 = sand.u32 %s27, 1
        %s179 = scalar_lea.sflag [#allocation3], %s178
        %s180 = sand.u32 %s27, 1
        %s181 = smul.addr %s180, 16
        %s182 = scalar_lea.vmem [#allocation2], %s181
        %p183 = pneg %p40
        %p184 = pneg %p37
        %s185 = sand.u32 %s53, 1
        %s186 = scalar_lea.sflag [#allocation5], %s185
        %s187 = sand.u32 %s53, 1
        %s188 = smul.addr %s187, 16
        %s189 = scalar_lea.vmem [#allocation4], %s188
        %p190 = pneg %p66
        %p191 = pneg %p63
        %p192 = pneg %p92
        %p193 = pneg %p89
        %s194 = smul.u32 2, %s19
        %p195 = scmp.lt.s32.totalorder %s194, 3
        %s196 = scalar_select %p195, %s194, 3
        %s197 = smul.addr %s196, 8
        %s198 = scalar_lea.vmem %s2, %s197
        %s199 = smul.u32 2, %s19
        %s200 = smul.u32 2, %s19
        %s201 = smul.u32 2, %s19
        %p202 = scmp.lt.s32.totalorder %s201, 3
        %s203 = scalar_select %p202, %s201, 3
        %s204 = smul.addr %s203, 8
        %s205 = scalar_lea.vmem %s2, %s204
        %s206 = smul.u32 2, %s19
        %v207 = vld [vmem:[%s164] sm:$0xff]
        %v208 = vld [vmem:[%s164 + $0x8] sm:$0xff]
        %v209 = vld [vmem:[%s173] sm:$0xff]
        %v210 = vld [vmem:[%s173 + $0x8] sm:$0xff]
        %v211 = vmul.f32 %v207, %v209
        %v212 = vmul.f32 %v208, %v210
        %vm213 = vcmask 261120
        %v214 = vsel %vm213, %v211, 0.0
        %215 = vadd.xlane.f32.xlu0 %v214
        %v216 = vpop.xlane.xlu0 %215
        %v217 = vsel %vm213, %v212, 0.0
        %218 = vadd.xlane.f32.xlu0 %v217
        %v219 = vpop.xlane.xlu0 %218
        %v220 = vmul.f32 %v207, %v207
        %v221 = vmul.f32 %v208, %v208
        %v222 = vsel %vm213, %v220, 0.0
        %223 = vadd.xlane.f32.xlu0 %v222
        %v224 = vpop.xlane.xlu0 %223
        %v225 = vsel %vm213, %v221, 0.0
        %226 = vadd.xlane.f32.xlu0 %v225
        %v227 = vpop.xlane.xlu0 %226
        %v228 = vmul.f32 %v209, %v209
        %v229 = vmul.f32 %v210, %v210
        %v230 = vsel %vm213, %v228, 0.0
        %231 = vadd.xlane.f32.xlu0 %v230
        %v232 = vpop.xlane.xlu0 %231
        %v233 = vsel %vm213, %v229, 0.0
        %234 = vadd.xlane.f32.xlu0 %v233
        %v235 = vpop.xlane.xlu0 %234
        %v236 = vmax.f32 %v224, 1e-24
        %v237 = vmax.f32 %v227, 1e-24
        %v238 = vrsqrt.pop %v236
        %v239 = vrsqrt.pop %v237
        %v240 = vmax.f32 %v232, 1e-24
        %v241 = vmax.f32 %v235, 1e-24
        %v242 = vrsqrt.pop %v240
        %v243 = vrsqrt.pop %v241
        %v244 = vmul.f32 %v216, %v238
        %v245 = vmul.f32 %v219, %v239
        %v246 = vmul.f32 %v244, %v242
        %v247 = vmul.f32 %v245, %v243
        %v248 = vsub.f32 0.0, %v246
        %v249 = vsub.f32 0.0, %v247
        %v250 = vxor.u32 %v248, 2147483648
        %v251 = vxor.u32 %v249, 2147483648
        %v252 = vmul.f32 %v250, 1.442695
        %v253 = vpow.pop %v252
        %v254 = vmul.f32 %v251, 1.442695
        %v255 = vpow.pop %v254
        %v256 = vadd.f32 %v253, 1.0
        %v257 = vadd.f32 %v255, 1.0
        %v258 = vrcp.pop %v256
        %v259 = vmul.f32 1.0, %v258
        %v260 = vrcp.pop %v257
        %v261 = vmul.f32 1.0, %v260
        %vm262 = vcmask 7168
        %263 = vst.msk [vmem:[%s205] sm:$0xff] %vm262, %v259
        %264 = vst.msk [vmem:[%s205 + $0x8] sm:$0xff] %vm262, %v261
        %s265 = smul.u32 2, %s19
        %p266 = scmp.lt.s32.totalorder %s265, 3
        %s267 = scalar_select %p266, %s265, 3
        %s268 = smul.addr %s267, 8
        %s269 = scalar_lea.vmem %s2, %s268
        // Predicated region
        $region37: #{cia_forward.2} parent=27 // pred_check
          %p270 = pneg %p89
        $region38: #{cia_forward.2} parent=27 // pred_check_branch
          %272 = sbr.rel (%p270) target = $region40
        $region39: #{cia_forward.2} parent=27 // pred_region
          %s273 = smul.u32 2, %s19
        $region40: #{cia_forward.2} parent=27 // pred_fallthru
          _
      $region28: #{cia_forward.2} parent=5 // pred_fallthru
        _
      %p274 = scmp.le.s32.totalorder 2, %s14
      // Predicated region
      $region41: #{cia_forward.2} parent=5 // pred_check
        %p275 = pneg %p274
      $region42: #{cia_forward.2} parent=5 // pred_check_branch
        %277 = sbr.rel (%p275) target = $region44
      $region43: #{cia_forward.2} parent=5 // pred_region
        %s278 = ssub.s32 %s14, 2
        // Predicated region
        $region45: #{cia_forward.2} parent=43 // pred_check
          %p279 = pneg %p95
        $region46: #{cia_forward.2} parent=43 // pred_check_branch
          %281 = sbr.rel (%p279) target = $region48
        $region47: #{cia_forward.2} parent=43 // pred_region
          %s282 = smul.u32 2, %s20
          %p283 = scmp.lt.s32.totalorder %s282, 3
          %s284 = scalar_select %p283, %s282, 3
          %s285 = smul.addr %s284, 8
          %s286 = scalar_lea.vmem %s2, %s285
        $region48: #{cia_forward.2} parent=43 // pred_fallthru
          _
      $region44: #{cia_forward.2} parent=5 // pred_fallthru
        _
    $region6: #{cia_forward.2} parent=1 // loop_footer
      %s18 = sadd.s32 1, %s14
    $region7: #{cia_forward.2} parent=1 // loop_footer_branch
      %13 = sbr.rel target = $region3
    $region8: #{cia_forward.2} parent=1 // loop_exit
      _
    %287 = vsyncpa [#allocation3], 1
    %s288 = scalar_lea.sflag [#allocation3], 1
    %289 = vsyncpa %s288, 1
    %290 = vsyncpa [#allocation5], 1
    %s291 = scalar_lea.sflag [#allocation5], 1
    %292 = vsyncpa %s291, 1

// kernel: cia_forward.3
$region0: #{cia_forward.3}
  #allocation0 [shape = 'u32[]', space=smem, size = 0x4, offset = 0x4, fixed_abs, tag = 'smem constant byte address 0x4 - core index']
  #allocation1 [shape = 'u32[144,128]{1,0:T(1,128)}', space=vmem, size = 0x12000, scoped, tag = 'internal scratch']
  %s0 = inlined_call_operand.vmem [shape: f32[32,32], index: 0, kind: input, shape index: {}]
  %s1 = inlined_call_operand.vmem [shape: f32[32,1], index: 1, kind: input, shape index: {}]
  %s2 = inlined_call_operand.hbm [shape: f32[32,32], index: 2, kind: output, shape index: {}]
  %s3 = sld [smem:[#allocation0]]
  $region41: #{cia_forward.3} parent=0
    _
  %s5 = ssub.s32 1, %s3
  %s6 = scalar_select 0, %s5, %s3
  $region1: #{cia_forward.3} parent=0
    #allocation2 [shape = 'u8[16384]{0}', space=vmem, size = 0x4000, scoped, tag = 'output window, operand 0']
    #allocation3 [shape = 's32[2]{0}', space=sflag, size = 0x8, scoped, tag = 'scoped memory for cia_forward.3']
    %7 = vsyncpa [#allocation3], 0
    %s8 = scalar_lea.sflag [#allocation3], 1
    %9 = vsyncpa %s8, 0
    loop: start=0, step=1, limit=4
    $region2: #{cia_forward.3} parent=1 // loop_pre_header
      _
    $region3: #{cia_forward.3} parent=1 // loop_header
      %s11 = sphi 0, %s15
      %p12 = scmp.ge.s32.totalorder %s11, 4
      %s21 = sphi 0, %s23
      %s24 = sphi 0, %s21
      %s25 = sphi 0, %s24
      %s41 = sphi 0, %s25
      %s47 = sphi 0, %s49
      %s50 = sphi 0, %s47
      %s51 = sphi 0, %s50
      %s67 = sphi 0, %s51
      %s73 = sphi 0, %s75
      %s76 = sphi 0, %s73
      %s77 = sphi 0, %s76
      %s93 = sphi 0, %s77
    $region4: #{cia_forward.3} parent=1 // loop_header_branch
      %14 = sbr.rel (%p12) target = $region8
    $region5: #{cia_forward.3} parent=1 // loop_body
      %s16 = ssub.s32 %s11, 1
      %s17 = ssub.s32 %s11, 2
      %s18 = sadd.s32 %s11, 1
      %s19 = ssub.s32 %s11, %s18
      %p20 = scmp.eq.s32.totalorder %s19, 0
      %s22 = sadd.s32 %s21, 1
      %s23 = scalar_select %p20, %s21, %s22
      %p26 = pneg %p20
      %p27 = scmp.eq.s32.totalorder %s11, 1
      %p28 = por %p26, %p27
      %p29 = scmp.ne.s32.totalorder %s21, %s24
      %p30 = scmp.eq.s32.totalorder %s11, 0
      %p31 = por %p29, %p30
      %p32 = scmp.ne.s32.totalorder %s21, %s24
      %p33 = scmp.eq.s32.totalorder %s16, 1
      %p34 = por %p32, %p33
      %p35 = scmp.ne.s32.totalorder %s24, %s25
      %p36 = scmp.eq.s32.totalorder %s16, 0
      %p37 = por %p35, %p36
      %p38 = scmp.ne.s32.totalorder %s24, %s25
      %p39 = scmp.eq.s32.totalorder %s17, 1
      %p40 = por %p38, %p39
      %p42 = scmp.ne.s32.totalorder %s25, %s41
      %p43 = scmp.eq.s32.totalorder %s17, 0
      %p44 = por %p42, %p43
      %s45 = ssub.s32 %s11, %s18
      %p46 = scmp.eq.s32.totalorder %s45, 0
      %s48 = sadd.s32 %s47, 1
      %s49 = scalar_select %p46, %s47, %s48
      %p52 = pneg %p46
      %p53 = scmp.eq.s32.totalorder %s11, 1
      %p54 = por %p52, %p53
      %p55 = scmp.ne.s32.totalorder %s47, %s50
      %p56 = scmp.eq.s32.totalorder %s11, 0
      %p57 = por %p55, %p56
      %p58 = scmp.ne.s32.totalorder %s47, %s50
      %p59 = scmp.eq.s32.totalorder %s16, 1
      %p60 = por %p58, %p59
      %p61 = scmp.ne.s32.totalorder %s50, %s51
      %p62 = scmp.eq.s32.totalorder %s16, 0
      %p63 = por %p61, %p62
      %p64 = scmp.ne.s32.totalorder %s50, %s51
      %p65 = scmp.eq.s32.totalorder %s17, 1
      %p66 = por %p64, %p65
      %p68 = scmp.ne.s32.totalorder %s51, %s67
      %p69 = scmp.eq.s32.totalorder %s17, 0
      %p70 = por %p68, %p69
      %s71 = ssub.s32 %s11, %s18
      %p72 = scmp.eq.s32.totalorder %s71, 0
      %s74 = sadd.s32 %s73, 1
      %s75 = scalar_select %p72, %s73, %s74
      %p78 = pneg %p72
      %p79 = scmp.eq.s32.totalorder %s11, 1
      %p80 = por %p78, %p79
      %p81 = scmp.ne.s32.totalorder %s73, %s76
      %p82 = scmp.eq.s32.totalorder %s11, 0
      %p83 = por %p81, %p82
      %p84 = scmp.ne.s32.totalorder %s73, %s76
      %p85 = scmp.eq.s32.totalorder %s16, 1
      %p86 = por %p84, %p85
      %p87 = scmp.ne.s32.totalorder %s76, %s77
      %p88 = scmp.eq.s32.totalorder %s16, 0
      %p89 = por %p87, %p88
      %p90 = scmp.ne.s32.totalorder %s76, %s77
      %p91 = scmp.eq.s32.totalorder %s17, 1
      %p92 = por %p90, %p91
      %p94 = scmp.ne.s32.totalorder %s77, %s93
      %p95 = scmp.eq.s32.totalorder %s17, 0
      %p96 = por %p94, %p95
      %p97 = scmp.le.s32.totalorder 1, %s11
      %p98 = scmp.lt.s32.totalorder %s11, 3
      %p99 = pnand %p97, %p98
      %p100 = pneg %p99
      // Predicated region
      $region9: #{cia_forward.3} parent=5 // pred_check
        _
      $region10: #{cia_forward.3} parent=5 // pred_check_branch
        %102 = sbr.rel (%p99) target = $region12
      $region11: #{cia_forward.3} parent=5 // pred_region
        %s103 = ssub.s32 %s11, 1
      $region12: #{cia_forward.3} parent=5 // pred_fallthru
        _
      %p104 = scmp.lt.s32.totalorder %s11, 2
      // Predicated region
      $region13: #{cia_forward.3} parent=5 // pred_check
        %p105 = pneg %p104
      $region14: #{cia_forward.3} parent=5 // pred_check_branch
        %107 = sbr.rel (%p105) target = $region16
      $region15: #{cia_forward.3} parent=5 // pred_region
        // Predicated region
        $region17: #{cia_forward.3} parent=15 // pred_check
          %p108 = pneg %p31
        $region18: #{cia_forward.3} parent=15 // pred_check_branch
          %110 = sbr.rel (%p108) target = $region20
        $region19: #{cia_forward.3} parent=15 // pred_region
          %s111 = smul.u32 2, %s11
          %p112 = scmp.lt.s32.totalorder %s111, 3
          %s113 = scalar_select %p112, %s111, 3
          %s114 = smul.addr %s113, 8
          %s115 = scalar_lea.vmem %s0, %s114
          %s116 = smul.u32 2, %s11
        $region20: #{cia_forward.3} parent=15 // pred_fallthru
          _
        // Predicated region
        $region21: #{cia_forward.3} parent=15 // pred_check
          %p117 = pneg %p57
        $region22: #{cia_forward.3} parent=15 // pred_check_branch
          %119 = sbr.rel (%p117) target = $region24
        $region23: #{cia_forward.3} parent=15 // pred_region
          %s120 = smul.u32 2, %s11
          %p121 = scmp.lt.s32.totalorder %s120, 3
          %s122 = scalar_select %p121, %s120, 3
          %s123 = smul.addr %s122, 8
          %s124 = scalar_lea.vmem %s1, %s123
          %s125 = smul.u32 2, %s11
        $region24: #{cia_forward.3} parent=15 // pred_fallthru
          _
      $region16: #{cia_forward.3} parent=5 // pred_fallthru
        _
      %p126 = scmp.le.s32.totalorder 1, %s11
      %p127 = scmp.lt.s32.totalorder %s11, 3
      %p128 = pnand %p126, %p127
      %p129 = pneg %p128
      // Predicated region
      $region25: #{cia_forward.3} parent=5 // pred_check
        _
      $region26: #{cia_forward.3} parent=5 // pred_check_branch
        %131 = sbr.rel (%p128) target = $region28
      $region27: #{cia_forward.3} parent=5 // pred_region
        %s132 = ssub.s32 %s11, 1
        %s133 = smul.u32 2, %s16
        %p134 = scmp.lt.s32.totalorder %s133, 3
        %s135 = scalar_select %p134, %s133, 3
        %s136 = smul.addr %s135, 8
        %s137 = scalar_lea.vmem %s0, %s136
        %p138 = pneg %p37
        %p139 = pneg %p34
        %s140 = smul.u32 2, %s16
        %p141 = scmp.lt.s32.totalorder %s140, 3
        %s142 = scalar_select %p141, %s140, 3
        %s143 = smul.addr %s142, 8
        %s144 = scalar_lea.vmem %s1, %s143
        %p145 = pneg %p63
        %p146 = pneg %p60
        %p147 = pneg %p89
        %p148 = pneg %p86
        %s149 = sand.u32 %s76, 1
        %s150 = scalar_lea.sflag [#allocation3], %s149
        %s151 = sand.u32 %s76, 1
        %s152 = smul.addr %s151, 16
        %s153 = scalar_lea.vmem [#allocation2], %s152
        %s154 = smul.u32 2, %s16
        %p155 = scmp.lt.s32.totalorder %s154, 3
        %s156 = scalar_select %p155, %s154, 3
        %s157 = smul.addr %s156, 8
        %s158 = scalar_lea.vmem %s0, %s157
        %s159 = smul.u32 2, %s16
        %s160 = smul.u32 2, %s16
        %p161 = scmp.lt.s32.totalorder %s160, 3
        %s162 = scalar_select %p161, %s160, 3
        %s163 = smul.addr %s162, 8
        %s164 = scalar_lea.vmem %s1, %s163
        %s165 = smul.u32 2, %s16
        %s166 = smul.u32 2, %s16
        %v167 = vld [vmem:[%s158] sm:$0xff]
        %v168 = vld [vmem:[%s158 + $0x8] sm:$0xff]
        %v169 = vld [vmem:[%s164] sm:$0xff]
        %v170 = vld [vmem:[%s164 + $0x8] sm:$0xff]
        %172 = vset.pattern.permute.xlu0 0
        %173 = vperm.xlu0 %172, %v169
        %v174 = vpop.permute.xlu0 %173
        %177 = vset.pattern.permute.xlu0 0
        %178 = vperm.xlu0 %177, %v170
        %v179 = vpop.permute.xlu0 %178
        %v181 = vmul.f32 %v167, %v174
        %v182 = vmul.f32 %v168, %v179
        %vm183 = vcmask 261120
        %184 = vst.msk [vmem:[%s153] sm:$0xff] %vm183, %v181
        %185 = vst.msk [vmem:[%s153 + $0x8] sm:$0xff] %vm183, %v182
        %s186 = sand.u32 %s76, 1
        %s187 = scalar_lea.sflag [#allocation3], %s186
        %s188 = sand.u32 %s76, 1
        %s189 = smul.addr %s188, 16
        %s190 = scalar_lea.vmem [#allocation2], %s189
        // Predicated region
        $region29: #{cia_forward.3} parent=27 // pred_check
          %p191 = pneg %p86
        $region30: #{cia_forward.3} parent=27 // pred_check_branch
          %193 = sbr.rel (%p191) target = $region32
        $region31: #{cia_forward.3} parent=27 // pred_region
          %s194 = smul.u32 2, %s16
          %s196 = ssub.s32 256, 256
          %197 = vsyncadd %s187, %s196
          %s198 = smul.addr %s194, 128
          %s199 = scalar_lea.hbm %s2, %s198
          %s200 = sshll.u32 %s190, 4
          %s201 = int_to_ptr.vmem [resolvable:$true] %s200
          %206 = dma.vmem_to_hbm [thread:$0]  %s201, 256, %s199, %s187, 128, 128, 8
        $region32: #{cia_forward.3} parent=27 // pred_fallthru
          _
      $region28: #{cia_forward.3} parent=5 // pred_fallthru
        _
      %p207 = scmp.le.s32.totalorder 2, %s11
      // Predicated region
      $region33: #{cia_forward.3} parent=5 // pred_check
        %p208 = pneg %p207
      $region34: #{cia_forward.3} parent=5 // pred_check_branch
        %210 = sbr.rel (%p208) target = $region36
      $region35: #{cia_forward.3} parent=5 // pred_region
        %s211 = ssub.s32 %s11, 2
        // Predicated region
        $region37: #{cia_forward.3} parent=35 // pred_check
          %p212 = pneg %p92
        $region38: #{cia_forward.3} parent=35 // pred_check_branch
          %214 = sbr.rel (%p212) target = $region40
        $region39: #{cia_forward.3} parent=35 // pred_region
          %s215 = sand.u32 %s77, 1
          %s216 = scalar_lea.sflag [#allocation3], %s215
          %s217 = sand.u32 %s77, 1
          %s218 = smul.addr %s217, 16
          %s219 = scalar_lea.vmem [#allocation2], %s218
          %220 = dma.done %s216, 256
        $region40: #{cia_forward.3} parent=35 // pred_fallthru
          _
      $region36: #{cia_forward.3} parent=5 // pred_fallthru
        _
    $region6: #{cia_forward.3} parent=1 // loop_footer
      %s15 = sadd.s32 1, %s11
    $region7: #{cia_forward.3} parent=1 // loop_footer_branch
      %10 = sbr.rel target = $region3
    $region8: #{cia_forward.3} parent=1 // loop_exit
      _
    %221 = vsyncpa [#allocation3], 1
    %s222 = scalar_lea.sflag [#allocation3], 1
    %223 = vsyncpa %s222, 1

</llo_original>
